<compile_context>
chip_gen: v5e
topology: v5e:2x2
jax: 0.10.0
libtpu: 0.0.40
codegen_flags: <defaults>
</compile_context>

<pallas_src>
import math

import jax
import jax.numpy as jnp
from jax.experimental import pallas as pl
from jax.experimental.pallas import tpu as pltpu


def _nbytes(shape, dtype):
    return math.prod(shape) * jnp.dtype(dtype).itemsize


# ----------------------------------------------------------------------------
# Single-step cell kernel (exact semantics of CustomRNNCell.forward)
# ----------------------------------------------------------------------------
def rnn_cell_kernel(x_ref, h_ref, w_in_ref, w_h_ref, b_h_ref,
                    w_out_ref, b_out_ref, h_out_ref, y_out_ref):
    cdt = w_in_ref.dtype
    # Two MXU dots, f32 accumulation; activations cast to weight dtype in-vreg.
    z = (jnp.dot(x_ref[...].astype(cdt), w_in_ref[...],
                 preferred_element_type=jnp.float32)
         + jnp.dot(h_ref[...].astype(cdt), w_h_ref[...],
                   preferred_element_type=jnp.float32)
         + b_h_ref[...])
    h = jax.nn.sigmoid(z)                               # f32 on EUP
    h_out_ref[...] = h.astype(h_out_ref.dtype)
    y = jnp.dot(h.astype(cdt), w_out_ref[...],
                preferred_element_type=jnp.float32) + b_out_ref[...]
    y_out_ref[...] = y.astype(y_out_ref.dtype)


# ----------------------------------------------------------------------------
# Fused sequence kernel: input proj + recurrence + output proj per chunk
# ----------------------------------------------------------------------------
def rnn_seq_kernel(x_ref, w_in_ref, w_h_ref, b_h_ref, w_out_ref, b_out_ref,
                   h0_ref, hseq_ref, yseq_ref, h_carry):
    Tc, Bb, D = x_ref.shape
    H = w_h_ref.shape[1]
    cdt = w_in_ref.dtype

    # New batch block (t == 0): load the initial hidden state for this slice.
    @pl.when(pl.program_id(1) == 0)
    def _():
        h_carry[...] = h0_ref[...].astype(jnp.float32)

    # Chunk input projection: one (Tc*Bb, D) @ (D, H) MXU matmul, f32 acc.
    x_flat = x_ref[...].reshape(Tc * Bb, D).astype(cdt)
    inp = jnp.dot(x_flat, w_in_ref[...],
                  preferred_element_type=jnp.float32).reshape(Tc, Bb, H)

    b_h = b_h_ref[...]

    # Serial recurrence over the Tc timesteps (Tc is static -> fully unrolled).
    # Hidden state stays in the VMEM scratch / vregs; no HBM round-trip.
    h = h_carry[...]
    h_steps = []
    for t in range(Tc):
        z = inp[t] + jnp.dot(h.astype(cdt), w_h_ref[...],
                             preferred_element_type=jnp.float32) + b_h
        h = jax.nn.sigmoid(z)
        h_steps.append(h)
    h_carry[...] = h

    h_all = jnp.stack(h_steps, axis=0)                  # (Tc, Bb, H) f32
    hseq_ref[...] = h_all.astype(hseq_ref.dtype)        # one lane-dense store

    # Chunk output projection: one (Tc*Bb, H) @ (H, H) + b_out matmul.
    y = (jnp.dot(h_all.reshape(Tc * Bb, H).astype(cdt), w_out_ref[...],
                 preferred_element_type=jnp.float32)
         + b_out_ref[...]).reshape(Tc, Bb, H)
    yseq_ref[...] = y.astype(yseq_ref.dtype)


# ----------------------------------------------------------------------------
# Wrappers
# ----------------------------------------------------------------------------
def pack_params(params, compute_dtype=jnp.float32):
    """One-time weight repack: transpose to (in, out); optionally cast MXU
    operands to bf16 (biases stay f32 and are added to the f32 accumulator)."""
    H = params["w_h"].shape[0]
    return {
        "w_in_t": params["w_in"].T.astype(compute_dtype),    # (D, H)
        "w_h_t": params["w_h"].T.astype(compute_dtype),      # (H, H)
        "w_out_t": params["w_out"].T.astype(compute_dtype),  # (H, H)
        "b_h": params["b_h"].reshape(1, H).astype(jnp.float32),
        "b_out": params["b_out"].reshape(1, H).astype(jnp.float32),
    }


def custom_rnn_cell(prev_hidden, word_embedding, packed):
    """Single-step cell: returns (hidden_state, output), same as the module."""
    B, H = prev_hidden.shape
    D = word_embedding.shape[1]
    out_dtype = prev_hidden.dtype
    cdt = packed["w_in_t"].dtype

    vmem = pl.BlockSpec(memory_space=pltpu.MemorySpace.VMEM)
    cost = pl.CostEstimate(
        flops=2 * B * H * (D + 2 * H),
        transcendentals=2 * B * H,          # sigmoid ~ exp + reciprocal
        bytes_accessed=(_nbytes((B, D), word_embedding.dtype)
                        + _nbytes((B, H), prev_hidden.dtype)
                        + _nbytes((D, H), cdt) + 2 * _nbytes((H, H), cdt)
                        + 2 * _nbytes((1, H), jnp.float32)
                        + 2 * _nbytes((B, H), out_dtype)),
    )

    h_new, y = pl.pallas_call(
        rnn_cell_kernel,
        out_shape=(
            jax.ShapeDtypeStruct((B, H), out_dtype),   # hidden_state
            jax.ShapeDtypeStruct((B, H), out_dtype),   # output
        ),
        in_specs=[vmem] * 7,
        out_specs=(vmem, vmem),
        cost_estimate=cost,
    )(word_embedding, prev_hidden, packed["w_in_t"], packed["w_h_t"],
      packed["b_h"], packed["w_out_t"], packed["b_out"])
    return h_new, y


def custom_rnn_sequence(h0, x_seq, packed, *, chunk=8, batch_block=None):
    """Apply the cell recurrently over x_seq: (T, B, D) -> (h_seq, y_seq),
    each (T, B, H). One fused pallas_call; only h @ W_h^T is on the serial
    critical path, and the hidden state never leaves VMEM."""
    T, B, D = x_seq.shape
    H = h0.shape[1]
    out_dtype = h0.dtype
    cdt = packed["w_in_t"].dtype

    # Largest chunk of timesteps <= `chunk` that divides T.
    Tc = 1
    for c in range(min(chunk, T), 0, -1):
        if T % c == 0:
            Tc = c
            break

    # Independent recurrences per batch block; leading grid axis is "parallel"
    # (megacore / 2 TCs on v7x). Keep >= 8 sublanes per block.
    if batch_block is None:
        batch_block = B
    if B % batch_block != 0 or (batch_block != B and batch_block % 8 != 0):
        batch_block = B
    nb = B // batch_block
    nt = T // Tc

    # VMEM budget: resident weights/biases/h0 + double-buffered x/h/y blocks
    # + f32 carry scratch.  Sized explicitly so it also fits v7x (64 MiB VMEM).
    resident = (_nbytes((D, H), cdt) + 2 * _nbytes((H, H), cdt)
                + 2 * _nbytes((1, H), jnp.float32)
                + _nbytes((batch_block, H), h0.dtype))
    per_step = (_nbytes((Tc, batch_block, D), x_seq.dtype)
                + 2 * _nbytes((Tc, batch_block, H), out_dtype))
    vmem_bytes = resident + 2 * per_step + _nbytes((batch_block, H), jnp.float32)
    vmem_limit = int(min(max(2 * vmem_bytes, 4 << 20), 64 << 20))

    cost = pl.CostEstimate(
        flops=2 * T * B * H * (D + 2 * H),
        transcendentals=2 * T * B * H,
        bytes_accessed=(_nbytes((T, B, D), x_seq.dtype)
                        + 2 * _nbytes((T, B, H), out_dtype)
                        + nb * resident),
    )

    grid_spec = pltpu.PrefetchScalarGridSpec(
        num_scalar_prefetch=0,
        grid=(nb, nt),
        in_specs=[
            pl.BlockSpec((Tc, batch_block, D), lambda b, t: (t, b, 0)),  # x chunk
            pl.BlockSpec((D, H), lambda b, t: (0, 0)),                    # W_in^T
            pl.BlockSpec((H, H), lambda b, t: (0, 0)),                    # W_h^T
            pl.BlockSpec((1, H), lambda b, t: (0, 0)),                    # b_h
            pl.BlockSpec((H, H), lambda b, t: (0, 0)),                    # W_out^T
            pl.BlockSpec((1, H), lambda b, t: (0, 0)),                    # b_out
            pl.BlockSpec((batch_block, H), lambda b, t: (b, 0)),          # h0 slice
        ],
        out_specs=[
            pl.BlockSpec((Tc, batch_block, H), lambda b, t: (t, b, 0)),   # h_seq
            pl.BlockSpec((Tc, batch_block, H), lambda b, t: (t, b, 0)),   # y_seq
        ],
        scratch_shapes=[pltpu.VMEM((batch_block, H), jnp.float32)],       # carry
    )

    h_seq, y_seq = pl.pallas_call(
        rnn_seq_kernel,
        out_shape=(jax.ShapeDtypeStruct((T, B, H), out_dtype),
                   jax.ShapeDtypeStruct((T, B, H), out_dtype)),
        grid_spec=grid_spec,
        compiler_params=pltpu.CompilerParams(
            dimension_semantics=("parallel", "arbitrary"),
            vmem_limit_bytes=vmem_limit),
        cost_estimate=cost,
    )(x_seq, packed["w_in_t"], packed["w_h_t"], packed["b_h"],
      packed["w_out_t"], packed["b_out"], h0)

    # TODO(synk): the per-step matmul is M=B rows; the recurrence only reaches
    # MXU throughput if the caller can batch many independent sequences
    # (B >= 128 on v5e, >= 256 on v6e/v7x) and split them across batch blocks.
    return h_seq, y_seq


# ----------------------------------------------------------------------------
# Reference + init
# ----------------------------------------------------------------------------
def init_params(key, hidden_dim, input_dim):
    k1, k2, k3, k4, k5 = jax.random.split(key, 5)
    lim_in = 1.0 / jnp.sqrt(input_dim)
    lim_h = 1.0 / jnp.sqrt(hidden_dim)
    return {
        "w_in": jax.random.uniform(k1, (hidden_dim, input_dim),
                                   jnp.float32, -lim_in, lim_in),
        "w_h": jax.random.uniform(k2, (hidden_dim, hidden_dim),
                                  jnp.float32, -lim_h, lim_h),
        "b_h": jax.random.uniform(k3, (hidden_dim,),
                                  jnp.float32, -lim_h, lim_h),
        "w_out": jax.random.uniform(k4, (hidden_dim, hidden_dim),
                                    jnp.float32, -lim_h, lim_h),
        "b_out": jax.random.uniform(k5, (hidden_dim,),
                                    jnp.float32, -lim_h, lim_h),
    }


def reference(prev_hidden, word_embedding, params):
    inp_proj = word_embedding @ params["w_in"].T
    hid_proj = prev_hidden @ params["w_h"].T + params["b_h"]
    h = jax.nn.sigmoid(inp_proj + hid_proj)
    y = h @ params["w_out"].T + params["b_out"]
    return h, y


if __name__ == "__main__":
    hidden_dim = 128
    input_dim = 64
    batch = 8
    seq_len = 8

    key = jax.random.PRNGKey(0)
    kp, kh, kx, ks = jax.random.split(key, 4)

    params = init_params(kp, hidden_dim, input_dim)
    prev_hidden = jax.random.normal(kh, (batch, hidden_dim), jnp.float32)
    word_embedding = jax.random.normal(kx, (batch, input_dim), jnp.float32)
    x_seq = jax.random.normal(ks, (seq_len, batch, input_dim), jnp.float32)

    h_ref, y_ref = reference(prev_hidden, word_embedding, params)

    # Sequential reference over seq_len timesteps.
    h_ref_list, y_ref_list = [], []
    h = prev_hidden
    for t in range(seq_len):
        h, yt = reference(h, x_seq[t], params)
        h_ref_list.append(h)
        y_ref_list.append(yt)
    h_ref_seq = jnp.stack(h_ref_list)
    y_ref_seq = jnp.stack(y_ref_list)

    # ---- single-step cell, f32 (exact module semantics) ----
    packed_f32 = pack_params(params, jnp.float32)
    h_new, y = custom_rnn_cell(prev_hidden, word_embedding, packed_f32)
    jax.block_until_ready((h_new, y))
    assert jnp.allclose(h_new, h_ref, atol=1e-4, rtol=1e-4)
    assert jnp.allclose(y, y_ref, atol=1e-4, rtol=1e-4)

    # ---- single-step cell, bf16 MXU operands (f32 acc + f32 sigmoid) ----
    packed_bf16 = pack_params(params, jnp.bfloat16)
    h_bf, y_bf = custom_rnn_cell(prev_hidden, word_embedding, packed_bf16)
    jax.block_until_ready((h_bf, y_bf))
    assert jnp.allclose(h_bf, h_ref, atol=5e-2, rtol=5e-2)
    assert jnp.allclose(y_bf, y_ref, atol=5e-2, rtol=5e-2)

    # ---- fused recurrent sequence, f32 ----
    h_seq, y_seq = custom_rnn_sequence(prev_hidden, x_seq, packed_f32)
    jax.block_until_ready((h_seq, y_seq))
    assert jnp.allclose(h_seq, h_ref_seq, atol=1e-4, rtol=1e-4)
    assert jnp.allclose(y_seq, y_ref_seq, atol=1e-4, rtol=1e-4)

    # ---- fused recurrent sequence, bf16 MXU operands (loose tolerance:
    #      per-step bf16 rounding of h before W_h compounds over T) ----
    h_seq_bf, y_seq_bf = custom_rnn_sequence(prev_hidden, x_seq, packed_bf16)
    jax.block_until_ready((h_seq_bf, y_seq_bf))
    assert jnp.allclose(h_seq_bf, h_ref_seq, atol=1e-1, rtol=1e-1)
    assert jnp.allclose(y_seq_bf, y_ref_seq, atol=1.5e-1, rtol=1.5e-1)

    print("KERNEL_OK")
</pallas_src>

<mosaic_0001>
module attributes {stable_mosaic.version = 11 : i64} {
  func.func @rnn_cell_kernel(%arg0: memref<8x64xf32, #tpu.memory_space<vmem>>, %arg1: memref<8x128xf32, #tpu.memory_space<vmem>>, %arg2: memref<64x128xf32, #tpu.memory_space<vmem>>, %arg3: memref<128x128xf32, #tpu.memory_space<vmem>>, %arg4: memref<1x128xf32, #tpu.memory_space<vmem>>, %arg5: memref<128x128xf32, #tpu.memory_space<vmem>>, %arg6: memref<1x128xf32, #tpu.memory_space<vmem>>, %arg7: memref<8x128xf32, #tpu.memory_space<vmem>>, %arg8: memref<8x128xf32, #tpu.memory_space<vmem>>) attributes {dimension_semantics = [], scalar_prefetch = 0 : i64, scratch_operands = 0 : i64, tpu.core_type = #tpu.core_type<tc>} {
    %c0 = arith.constant 0 : index
    %c0_0 = arith.constant 0 : index
    %0 = vector.load %arg0[%c0, %c0_0] : memref<8x64xf32, #tpu.memory_space<vmem>>, vector<8x64xf32>
    %c0_1 = arith.constant 0 : index
    %c0_2 = arith.constant 0 : index
    %1 = vector.load %arg2[%c0_1, %c0_2] : memref<64x128xf32, #tpu.memory_space<vmem>>, vector<64x128xf32>
    %cst = arith.constant dense<0.000000e+00> : vector<8x128xf32>
    %2 = tpu.matmul %0, %1, %cst {dimension_numbers = #tpu.dot_dimension_numbers<[1], [0], [0], [1], [0, 0, 1, 1], [], []>} : vector<8x64xf32>, vector<64x128xf32>, vector<8x128xf32> -> vector<8x128xf32>
    %c0_3 = arith.constant 0 : index
    %c0_4 = arith.constant 0 : index
    %3 = vector.load %arg1[%c0_3, %c0_4] : memref<8x128xf32, #tpu.memory_space<vmem>>, vector<8x128xf32>
    %c0_5 = arith.constant 0 : index
    %c0_6 = arith.constant 0 : index
    %4 = vector.load %arg3[%c0_5, %c0_6] : memref<128x128xf32, #tpu.memory_space<vmem>>, vector<128x128xf32>
    %cst_7 = arith.constant dense<0.000000e+00> : vector<8x128xf32>
    %5 = tpu.matmul %3, %4, %cst_7 {dimension_numbers = #tpu.dot_dimension_numbers<[1], [0], [0], [1], [0, 0, 1, 1], [], []>} : vector<8x128xf32>, vector<128x128xf32>, vector<8x128xf32> -> vector<8x128xf32>
    %6 = arith.addf %2, %5 : vector<8x128xf32>
    %c0_8 = arith.constant 0 : index
    %c0_9 = arith.constant 0 : index
    %7 = vector.load %arg4[%c0_8, %c0_9] : memref<1x128xf32, #tpu.memory_space<vmem>>, vector<1x128xf32>
    %8 = vector.broadcast %7 : vector<1x128xf32> to vector<8x128xf32>
    %9 = arith.addf %6, %8 : vector<8x128xf32>
    %10 = arith.negf %9 : vector<8x128xf32>
    %11 = math.exp %10 : vector<8x128xf32>
    %cst_10 = arith.constant 1.000000e+00 : f32
    %12 = vector.broadcast %cst_10 : f32 to vector<8x128xf32>
    %13 = arith.addf %12, %11 : vector<8x128xf32>
    %14 = arith.divf %12, %13 : vector<8x128xf32>
    %c0_11 = arith.constant 0 : index
    %c0_12 = arith.constant 0 : index
    %15 = vector.load %arg7[%c0_11, %c0_12] : memref<8x128xf32, #tpu.memory_space<vmem>>, vector<8x128xf32>
    tpu.vector_store %arg7[%c0_11, %c0_12], %14 {strides = array<i32>} : memref<8x128xf32, #tpu.memory_space<vmem>>, vector<8x128xf32>,
    %c0_13 = arith.constant 0 : index
    %c0_14 = arith.constant 0 : index
    %16 = vector.load %arg5[%c0_13, %c0_14] : memref<128x128xf32, #tpu.memory_space<vmem>>, vector<128x128xf32>
    %cst_15 = arith.constant dense<0.000000e+00> : vector<8x128xf32>
    %17 = tpu.matmul %14, %16, %cst_15 {dimension_numbers = #tpu.dot_dimension_numbers<[1], [0], [0], [1], [0, 0, 1, 1], [], []>} : vector<8x128xf32>, vector<128x128xf32>, vector<8x128xf32> -> vector<8x128xf32>
    %c0_16 = arith.constant 0 : index
    %c0_17 = arith.constant 0 : index
    %18 = vector.load %arg6[%c0_16, %c0_17] : memref<1x128xf32, #tpu.memory_space<vmem>>, vector<1x128xf32>
    %19 = vector.broadcast %18 : vector<1x128xf32> to vector<8x128xf32>
    %20 = arith.addf %17, %19 : vector<8x128xf32>
    %c0_18 = arith.constant 0 : index
    %c0_19 = arith.constant 0 : index
    %21 = vector.load %arg8[%c0_18, %c0_19] : memref<8x128xf32, #tpu.memory_space<vmem>>, vector<8x128xf32>
    tpu.vector_store %arg8[%c0_18, %c0_19], %20 {strides = array<i32>} : memref<8x128xf32, #tpu.memory_space<vmem>>, vector<8x128xf32>,
    return
  }
}

</mosaic_0001>

<llo_original>
// kernel: tpu_custom_call.1
$region0: #{tpu_custom_call.1}
  #allocation0 [shape = 'u32[]', space=smem, size = 0x4, offset = 0x4, fixed_abs, tag = 'smem constant byte address 0x4 - core index']
  #allocation1 [shape = 'u32[72,128]{1,0:T(1,128)}', space=vmem, size = 0x9000, scoped, tag = 'internal scratch']
  %s0 = inlined_call_operand.hbm [shape: f32[8,64], index: 0, kind: input, shape index: {}]
  %s1 = inlined_call_operand.hbm [shape: f32[8,128], index: 1, kind: input, shape index: {}]
  %s2 = inlined_call_operand.hbm [shape: f32[64,128], index: 2, kind: input, shape index: {}]
  %s3 = inlined_call_operand.hbm [shape: f32[128,128], index: 3, kind: input, shape index: {}]
  %s4 = inlined_call_operand.vmem [shape: f32[1,128], index: 4, kind: input, shape index: {}]
  %s5 = inlined_call_operand.hbm [shape: f32[128,128], index: 5, kind: input, shape index: {}]
  %s6 = inlined_call_operand.vmem [shape: f32[1,128], index: 6, kind: input, shape index: {}]
  %s7 = inlined_call_operand.hbm [shape: f32[8,128], index: 7, kind: output, shape index: {0}]
  %s8 = inlined_call_operand.hbm [shape: f32[8,128], index: 8, kind: output, shape index: {1}]
  %9 = xla_tuple %s7, %s8
  %s10 = sld [smem:[#allocation0]]
  $region66: #{tpu_custom_call.1} parent=0
    _
  %s12 = ssub.s32 1, %s10
  %s13 = scalar_select 0, %s12, %s10
  $region1: #{tpu_custom_call.1} parent=0
    #allocation2 [shape = 'u8[4096]{0}', space=vmem, size = 0x1000, scoped, tag = 'input window, operand 0, single buffered']
    #allocation3 [shape = 's32[1]{0}', space=sflag, size = 0x4, scoped, tag = 'scoped memory for tpu_custom_call.1']
    #allocation4 [shape = 's32[1]{0}', space=sflag, size = 0x4, scoped, tag = 'scoped memory for tpu_custom_call.1']
    #allocation5 [shape = 'u8[4096]{0}', space=vmem, size = 0x1000, scoped, tag = 'input window, operand 1, single buffered']
    #allocation6 [shape = 's32[1]{0}', space=sflag, size = 0x4, scoped, tag = 'scoped memory for tpu_custom_call.1']
    #allocation7 [shape = 'u8[32768]{0}', space=vmem, size = 0x8000, scoped, tag = 'input window, operand 2, single buffered']
    #allocation8 [shape = 'u8[65536]{0}', space=vmem, size = 0x10000, scoped, tag = 'input window, operand 3, single buffered']
    #allocation9 [shape = 's32[1]{0}', space=sflag, size = 0x4, scoped, tag = 'scoped memory for tpu_custom_call.1']
    #allocation10 [shape = 'u8[65536]{0}', space=vmem, size = 0x10000, scoped, tag = 'input window, operand 5, single buffered']
    #allocation11 [shape = 'u8[4096]{0}', space=vmem, size = 0x1000, scoped, tag = 'output window, operand 0, single buffered']
    #allocation12 [shape = 'u8[4096]{0}', space=vmem, size = 0x1000, scoped, tag = 'output window, operand 1, single buffered']
    #allocation13 [shape = 's32[1]{0}', space=sflag, size = 0x4, scoped, tag = 'scoped memory for tpu_custom_call.1']
    %14 = vsyncpa [#allocation3], 0
    %15 = vsyncpa [#allocation6], 0
    %16 = vsyncpa [#allocation9], 0
    %17 = vsyncpa [#allocation4], 0
    %18 = vsyncpa [#allocation13], 0
    // Predicated region
    $region2: #{tpu_custom_call.1} parent=1 // pred_check
      _
    $region3: #{tpu_custom_call.1} parent=1 // pred_check_branch
      %20 = sbr.rel (0) target = $region5
    $region4: #{tpu_custom_call.1} parent=1 // pred_region
      %22 = vsyncadd [#allocation3], 0
      %s24 = sshll.u32 %s0, 4
      %s25 = int_to_ptr.hbm [resolvable:$true] %s24
      %s26 = sshll.u32 [#allocation2], 4
      %s27 = int_to_ptr.vmem [resolvable:$true] %s26
      %29 = dma.hbm_to_vmem [thread:$0]  %s25, 128, %s27, [#allocation3]
    $region5: #{tpu_custom_call.1} parent=1 // pred_fallthru
      _
    // Predicated region
    $region6: #{tpu_custom_call.1} parent=1 // pred_check
      _
    $region7: #{tpu_custom_call.1} parent=1 // pred_check_branch
      %31 = sbr.rel (0) target = $region9
    $region8: #{tpu_custom_call.1} parent=1 // pred_region
      %33 = vsyncadd [#allocation6], 0
      %s35 = sshll.u32 %s1, 4
      %s36 = int_to_ptr.hbm [resolvable:$true] %s35
      %s37 = sshll.u32 [#allocation5], 4
      %s38 = int_to_ptr.vmem [resolvable:$true] %s37
      %40 = dma.hbm_to_vmem [thread:$0]  %s36, 128, %s38, [#allocation6]
    $region9: #{tpu_custom_call.1} parent=1 // pred_fallthru
      _
    // Predicated region
    $region10: #{tpu_custom_call.1} parent=1 // pred_check
      _
    $region11: #{tpu_custom_call.1} parent=1 // pred_check_branch
      %42 = sbr.rel (0) target = $region13
    $region12: #{tpu_custom_call.1} parent=1 // pred_region
      %44 = vsyncadd [#allocation6], 0
      %s45 = sshll.u32 %s2, 4
      %s46 = int_to_ptr.hbm [resolvable:$true] %s45
      %s47 = sshll.u32 [#allocation7], 4
      %s48 = int_to_ptr.vmem [resolvable:$true] %s47
      %53 = dma.hbm_to_vmem [thread:$0]  %s46, 1024, %s48, [#allocation6], 128, 128, 8
    $region13: #{tpu_custom_call.1} parent=1 // pred_fallthru
      _
    // Predicated region
    $region14: #{tpu_custom_call.1} parent=1 // pred_check
      _
    $region15: #{tpu_custom_call.1} parent=1 // pred_check_branch
      %55 = sbr.rel (0) target = $region17
    $region16: #{tpu_custom_call.1} parent=1 // pred_region
      %57 = vsyncadd [#allocation9], 0
      %s58 = sshll.u32 %s3, 4
      %s59 = int_to_ptr.hbm [resolvable:$true] %s58
      %s60 = sshll.u32 [#allocation8], 4
      %s61 = int_to_ptr.vmem [resolvable:$true] %s60
      %66 = dma.hbm_to_vmem [thread:$0]  %s59, 2048, %s61, [#allocation9], 128, 128, 8
    $region17: #{tpu_custom_call.1} parent=1 // pred_fallthru
      _
    // Predicated region
    $region18: #{tpu_custom_call.1} parent=1 // pred_check
      _
    $region19: #{tpu_custom_call.1} parent=1 // pred_check_branch
      %68 = sbr.rel (0) target = $region21
    $region20: #{tpu_custom_call.1} parent=1 // pred_region
      _
    $region21: #{tpu_custom_call.1} parent=1 // pred_fallthru
      _
    // Predicated region
    $region22: #{tpu_custom_call.1} parent=1 // pred_check
      _
    $region23: #{tpu_custom_call.1} parent=1 // pred_check_branch
      %70 = sbr.rel (0) target = $region25
    $region24: #{tpu_custom_call.1} parent=1 // pred_region
      %72 = vsyncadd [#allocation9], 0
      %s73 = sshll.u32 %s5, 4
      %s74 = int_to_ptr.hbm [resolvable:$true] %s73
      %s75 = sshll.u32 [#allocation10], 4
      %s76 = int_to_ptr.vmem [resolvable:$true] %s75
      %81 = dma.hbm_to_vmem [thread:$0]  %s74, 2048, %s76, [#allocation9], 128, 128, 8
    $region25: #{tpu_custom_call.1} parent=1 // pred_fallthru
      _
    // Predicated region
    $region26: #{tpu_custom_call.1} parent=1 // pred_check
      _
    $region27: #{tpu_custom_call.1} parent=1 // pred_check_branch
      %83 = sbr.rel (0) target = $region29
    $region28: #{tpu_custom_call.1} parent=1 // pred_region
      _
    $region29: #{tpu_custom_call.1} parent=1 // pred_fallthru
      _
    // Predicated region
    $region30: #{tpu_custom_call.1} parent=1 // pred_check
      _
    $region31: #{tpu_custom_call.1} parent=1 // pred_check_branch
      %85 = sbr.rel (0) target = $region33
    $region32: #{tpu_custom_call.1} parent=1 // pred_region
      %87 = dma.done [#allocation3], 128
    $region33: #{tpu_custom_call.1} parent=1 // pred_fallthru
      _
    // Predicated region
    $region34: #{tpu_custom_call.1} parent=1 // pred_check
      _
    $region35: #{tpu_custom_call.1} parent=1 // pred_check_branch
      %89 = sbr.rel (0) target = $region37
    $region36: #{tpu_custom_call.1} parent=1 // pred_region
      %91 = dma.done [#allocation6], 128
    $region37: #{tpu_custom_call.1} parent=1 // pred_fallthru
      _
    // Predicated region
    $region38: #{tpu_custom_call.1} parent=1 // pred_check
      _
    $region39: #{tpu_custom_call.1} parent=1 // pred_check_branch
      %93 = sbr.rel (0) target = $region41
    $region40: #{tpu_custom_call.1} parent=1 // pred_region
      %95 = dma.done [#allocation6], 1024
    $region41: #{tpu_custom_call.1} parent=1 // pred_fallthru
      _
    // Predicated region
    $region42: #{tpu_custom_call.1} parent=1 // pred_check
      _
    $region43: #{tpu_custom_call.1} parent=1 // pred_check_branch
      %97 = sbr.rel (0) target = $region45
    $region44: #{tpu_custom_call.1} parent=1 // pred_region
      %99 = dma.done [#allocation9], 2048
    $region45: #{tpu_custom_call.1} parent=1 // pred_fallthru
      _
    // Predicated region
    $region46: #{tpu_custom_call.1} parent=1 // pred_check
      _
    $region47: #{tpu_custom_call.1} parent=1 // pred_check_branch
      %101 = sbr.rel (0) target = $region49
    $region48: #{tpu_custom_call.1} parent=1 // pred_region
      %103 = dma.done [#allocation9], 2048
    $region49: #{tpu_custom_call.1} parent=1 // pred_fallthru
      _
    %v104 = vld [vmem:[#allocation2] sm:$0xff]
    %v105 = vld [vmem:[#allocation7] sm:$0xff]
    %v106 = vld [vmem:[#allocation7 + $0x8] sm:$0xff]
    %v107 = vld [vmem:[#allocation7 + $0x10] sm:$0xff]
    %v108 = vld [vmem:[#allocation7 + $0x18] sm:$0xff]
    %v109 = vld [vmem:[#allocation7 + $0x20] sm:$0xff]
    %v110 = vld [vmem:[#allocation7 + $0x28] sm:$0xff]
    %v111 = vld [vmem:[#allocation7 + $0x30] sm:$0xff]
    %v112 = vld [vmem:[#allocation7 + $0x38] sm:$0xff]
    %v113 = vld [vmem:[#allocation5] sm:$0xff]
    %v114 = vld [vmem:[#allocation8] sm:$0xff]
    %v115 = vld [vmem:[#allocation8 + $0x8] sm:$0xff]
    %v116 = vld [vmem:[#allocation8 + $0x10] sm:$0xff]
    %v117 = vld [vmem:[#allocation8 + $0x18] sm:$0xff]
    %v118 = vld [vmem:[#allocation8 + $0x20] sm:$0xff]
    %v119 = vld [vmem:[#allocation8 + $0x28] sm:$0xff]
    %v120 = vld [vmem:[#allocation8 + $0x30] sm:$0xff]
    %v121 = vld [vmem:[#allocation8 + $0x38] sm:$0xff]
    %v122 = vld [vmem:[#allocation8 + $0x40] sm:$0xff]
    %v123 = vld [vmem:[#allocation8 + $0x48] sm:$0xff]
    %v124 = vld [vmem:[#allocation8 + $0x50] sm:$0xff]
    %v125 = vld [vmem:[#allocation8 + $0x58] sm:$0xff]
    %v126 = vld [vmem:[#allocation8 + $0x60] sm:$0xff]
    %v127 = vld [vmem:[#allocation8 + $0x68] sm:$0xff]
    %v128 = vld [vmem:[#allocation8 + $0x70] sm:$0xff]
    %v129 = vld [vmem:[#allocation8 + $0x78] sm:$0xff]
    %130 = vmatpush.msra.mxu0 %v129
    %131 = vmatpush.msra.mxu0 %v128
    %132 = vmatpush.msra.mxu0 %v127
    %133 = vmatpush.msra.mxu0 %v126
    %134 = vmatpush.msra.mxu0 %v125
    %135 = vmatpush.msra.mxu0 %v124
    %136 = vmatpush.msra.mxu0 %v123
    %137 = vmatpush.msra.mxu0 %v122
    %138 = vmatpush.msra.mxu0 %v121
    %139 = vmatpush.msra.mxu0 %v120
    %140 = vmatpush.msra.mxu0 %v119
    %141 = vmatpush.msra.mxu0 %v118
    %142 = vmatpush.msra.mxu0 %v117
    %143 = vmatpush.msra.mxu0 %v116
    %144 = vmatpush.msra.mxu0 %v115
    %145 = vmatpush.msra.mxu0 %v114
    %146 = vmatmul.f32.gmra.mxu0 %v113
    %v147 = vpop.f32.mrf.mxu0
    %v148 = vadd.f32 0.0, %v147
    %149 = vdwg.mxu0
    %vm150 = vcmask 523264
    %v152 = vsel %vm150, %v104, 0
    %154 = vmatpush.msra.mxu0 0.0
    %155 = vmatpush.msra.mxu0 0.0
    %156 = vmatpush.msra.mxu0 0.0
    %157 = vmatpush.msra.mxu0 0.0
    %158 = vmatpush.msra.mxu0 0.0
    %159 = vmatpush.msra.mxu0 0.0
    %160 = vmatpush.msra.mxu0 0.0
    %161 = vmatpush.msra.mxu0 0.0
    %162 = vmatpush.msra.mxu0 %v112
    %163 = vmatpush.msra.mxu0 %v111
    %164 = vmatpush.msra.mxu0 %v110
    %165 = vmatpush.msra.mxu0 %v109
    %166 = vmatpush.msra.mxu0 %v108
    %167 = vmatpush.msra.mxu0 %v107
    %168 = vmatpush.msra.mxu0 %v106
    %169 = vmatpush.msra.mxu0 %v105
    %170 = vmatmul.f32.gmra.mxu0 %v152
    %v171 = vpop.f32.mrf.mxu0
    %v172 = vadd.f32 %v148, %v171
    %173 = vdwg.mxu0
    %v174 = vld [vmem:[%s4] sm:$0x1]
    %v176 = vperm.slane %v174, 0
    %v178 = vadd.f32 %v172, %v176
    %v179 = vxor.u32 %v178, 2147483648
    %v180 = vmul.f32 %v179, 1.442695
    %v181 = vpow.pop %v180
    %v182 = vadd.f32 %v181, 1.0
    %v183 = vrcp.pop %v182
    %v184 = vmul.f32 %v182, %v183
    %v185 = vsub.f32 1.0, %v184
    %v186 = vmul.f32 %v183, %v185
    %v187 = vadd.f32 %v183, %v186
    %vm188 = vweird.f32 %v182
    %vm189 = vweird.f32 %v183
    %vm190 = vmor %vm188, %vm189
    %v191 = vsel %vm190, %v183, %v187
    %v192 = vand.u32 2147483647, %v182
    %vm193 = vcmp.eq.f32.partialorder %v192, 8.507059e+37
    %v194 = vand.u32 %v182, 2147483648
    %v195 = vor.u32 1.1754944e-38, %v194
    %v196 = vsel %vm193, %v195, %v191
    %v197 = vmul.f32 1.0, %v196
    %198 = vst [vmem:[#allocation11] sm:$0xff] %v197
    %v199 = vld [vmem:[#allocation10] sm:$0xff]
    %v200 = vld [vmem:[#allocation10 + $0x8] sm:$0xff]
    %v201 = vld [vmem:[#allocation10 + $0x10] sm:$0xff]
    %v202 = vld [vmem:[#allocation10 + $0x18] sm:$0xff]
    %v203 = vld [vmem:[#allocation10 + $0x20] sm:$0xff]
    %v204 = vld [vmem:[#allocation10 + $0x28] sm:$0xff]
    %v205 = vld [vmem:[#allocation10 + $0x30] sm:$0xff]
    %v206 = vld [vmem:[#allocation10 + $0x38] sm:$0xff]
    %v207 = vld [vmem:[#allocation10 + $0x40] sm:$0xff]
    %v208 = vld [vmem:[#allocation10 + $0x48] sm:$0xff]
    %v209 = vld [vmem:[#allocation10 + $0x50] sm:$0xff]
    %v210 = vld [vmem:[#allocation10 + $0x58] sm:$0xff]
    %v211 = vld [vmem:[#allocation10 + $0x60] sm:$0xff]
    %v212 = vld [vmem:[#allocation10 + $0x68] sm:$0xff]
    %v213 = vld [vmem:[#allocation10 + $0x70] sm:$0xff]
    %v214 = vld [vmem:[#allocation10 + $0x78] sm:$0xff]
    %v215 = vld [vmem:[%s6] sm:$0x1]
    %v217 = vperm.slane %v215, 0
    %219 = vmatpush.msra.mxu0 %v214
    %220 = vmatpush.msra.mxu0 %v213
    %221 = vmatpush.msra.mxu0 %v212
    %222 = vmatpush.msra.mxu0 %v211
    %223 = vmatpush.msra.mxu0 %v210
    %224 = vmatpush.msra.mxu0 %v209
    %225 = vmatpush.msra.mxu0 %v208
    %226 = vmatpush.msra.mxu0 %v207
    %227 = vmatpush.msra.mxu0 %v206
    %228 = vmatpush.msra.mxu0 %v205
    %229 = vmatpush.msra.mxu0 %v204
    %230 = vmatpush.msra.mxu0 %v203
    %231 = vmatpush.msra.mxu0 %v202
    %232 = vmatpush.msra.mxu0 %v201
    %233 = vmatpush.msra.mxu0 %v200
    %234 = vmatpush.msra.mxu0 %v199
    %235 = vmatmul.f32.gmra.mxu0 %v197
    %v236 = vpop.f32.mrf.mxu0
    %v237 = vadd.f32 %v217, %v236
    %238 = vdwg.mxu0
    %239 = vst [vmem:[#allocation12] sm:$0xff] %v237
    // Predicated region
    $region50: #{tpu_custom_call.1} parent=1 // pred_check
      _
    $region51: #{tpu_custom_call.1} parent=1 // pred_check_branch
      %241 = sbr.rel (0) target = $region53
    $region52: #{tpu_custom_call.1} parent=1 // pred_region
      %243 = vsyncadd [#allocation4], 0
      %s245 = sshll.u32 [#allocation11], 4
      %s246 = int_to_ptr.vmem [resolvable:$true] %s245
      %s247 = sshll.u32 %s7, 4
      %s248 = int_to_ptr.hbm [resolvable:$true] %s247
      %250 = dma.vmem_to_hbm [thread:$0]  %s246, 128, %s248, [#allocation4]
    $region53: #{tpu_custom_call.1} parent=1 // pred_fallthru
      _
    // Predicated region
    $region54: #{tpu_custom_call.1} parent=1 // pred_check
      _
    $region55: #{tpu_custom_call.1} parent=1 // pred_check_branch
      %252 = sbr.rel (0) target = $region57
    $region56: #{tpu_custom_call.1} parent=1 // pred_region
      %254 = vsyncadd [#allocation13], 0
      %s256 = sshll.u32 [#allocation12], 4
      %s257 = int_to_ptr.vmem [resolvable:$true] %s256
      %s258 = sshll.u32 %s8, 4
      %s259 = int_to_ptr.hbm [resolvable:$true] %s258
      %261 = dma.vmem_to_hbm [thread:$0]  %s257, 128, %s259, [#allocation13]
    $region57: #{tpu_custom_call.1} parent=1 // pred_fallthru
      _
    // Predicated region
    $region58: #{tpu_custom_call.1} parent=1 // pred_check
      _
    $region59: #{tpu_custom_call.1} parent=1 // pred_check_branch
      %263 = sbr.rel (0) target = $region61
    $region60: #{tpu_custom_call.1} parent=1 // pred_region
      %265 = dma.done [#allocation4], 128
    $region61: #{tpu_custom_call.1} parent=1 // pred_fallthru
      _
    // Predicated region
    $region62: #{tpu_custom_call.1} parent=1 // pred_check
      _
    $region63: #{tpu_custom_call.1} parent=1 // pred_check_branch
      %267 = sbr.rel (0) target = $region65
    $region64: #{tpu_custom_call.1} parent=1 // pred_region
      %269 = dma.done [#allocation13], 128
    $region65: #{tpu_custom_call.1} parent=1 // pred_fallthru
      _
    %270 = vsyncpa [#allocation3], 1
    %271 = vsyncpa [#allocation6], 1
    %272 = vsyncpa [#allocation9], 1
    %273 = vsyncpa [#allocation4], 1
    %274 = vsyncpa [#allocation13], 1

</llo_original>
